<compile_context>
chip_gen: v5e
topology: v5e:2x2
jax: 0.10.0
libtpu: 0.0.40
codegen_flags: <defaults>
</compile_context>

<pallas_src>
import jax
import jax.numpy as jnp
from jax import lax
from jax.experimental import pallas as pl
from jax.experimental.pallas import tpu as pltpu


# --------------------------- Pallas kernel ---------------------------------
def _make_kernel(N, H):
    """Build the fused two-layer conv kernel for static batch N and height H."""

    def kernel(x_ref, w1_ref, p1_ref, w2_ref, p2_ref, o_ref, xpad_ref, hpad_ref):
        # x_ref  : (N*H, W*Cin)       bf16 input rows, (w, c) flattened on lanes
        # w1_ref : (3*W*Cin,  W*Cmid) bf16 banded conv1 weights (kh stacked on K)
        # p1_ref : (3, W*Cmid)        f32 [bias_bn_conv1, scale_bn1, bias_bn1]
        # w2_ref : (3*W*Cmid, W*Cout) bf16 banded conv2 weights (kh stacked on K)
        # p2_ref : (3, W*Cout)        f32 [bias_bn_conv2, scale_bn2, bias_bn2]
        # o_ref  : (N*H, W*Cout)      f32 lane-dense output
        # xpad_ref / hpad_ref : (P, W*C) bf16 VMEM scratch, shared-halo layout
        wc_in = xpad_ref.shape[1]
        wc_mid = hpad_ref.shape[1]
        P = xpad_ref.shape[0]           # N*(H+1) + 1 padded rows
        M = P - 2                       # matmul rows (all stencil positions)
        stride = H + 1                  # rows per image incl. one shared halo

        # ---- build shared-halo padded input (bf16) --------------------------
        for i in range(N + 1):          # zero halo rows (top of each image + end)
            xpad_ref[i * stride:i * stride + 1, :] = jnp.zeros((1, wc_in), jnp.bfloat16)
        for i in range(N):              # copy image rows
            xpad_ref[i * stride + 1:i * stride + 1 + H, :] = x_ref[i * H:(i + 1) * H, :]

        # ---- layer 1: conv1 (BN scale folded) + bias + ReLU, bn1 + relu1 ----
        # kh taps stacked along K -> single MXU matmul, f32 accumulation.
        lhs1 = jnp.concatenate(
            [xpad_ref[0:M, :], xpad_ref[1:M + 1, :], xpad_ref[2:M + 2, :]], axis=1)
        y = jnp.dot(lhs1, w1_ref[...], preferred_element_type=jnp.float32)
        y = jnp.maximum(y + p1_ref[0:1, :], 0.0)                   # BN bias + ReLU
        y = jnp.maximum(y * p1_ref[1:2, :] + p1_ref[2:3, :], 0.0)  # bn1 + relu1

        # ---- intermediate stays in VMEM (never touches HBM) -----------------
        hpad_ref[1:M + 1, :] = y.astype(jnp.bfloat16)
        for i in range(N + 1):          # re-zero halo rows (interior ones just got
            hpad_ref[i * stride:i * stride + 1, :] = jnp.zeros((1, wc_mid), jnp.bfloat16)

        # ---- layer 2: conv2 (BN scale folded) + bias + ReLU, then bn2 -------
        lhs2 = jnp.concatenate(
            [hpad_ref[0:M, :], hpad_ref[1:M + 1, :], hpad_ref[2:M + 2, :]], axis=1)
        z = jnp.dot(lhs2, w2_ref[...], preferred_element_type=jnp.float32)
        z = jnp.maximum(z + p2_ref[0:1, :], 0.0)                   # BN bias + ReLU
        z = z * p2_ref[1:2, :] + p2_ref[2:3, :]                    # bn2 (no relu)

        # ---- write valid rows of each image (lane-dense store) --------------
        for i in range(N):
            o_ref[i * H:(i + 1) * H, :] = z[i * stride:i * stride + H, :]

    return kernel


# --------------------------- wrapper helpers --------------------------------
def _fold_bn(gamma, beta, mean, var, eps=1e-5):
    scale = gamma / jnp.sqrt(var + eps)
    bias = beta - mean * scale
    return scale.astype(jnp.float32), bias.astype(jnp.float32)


def _banded_weights(w_hwio, out_scale, W):
    """(3,3,Cin,Cout) conv weights * per-out-channel scale -> (3*W*Cin, W*Cout) bf16.

    wb[kh, wi*Cin+ci, wo*Cout+co] = w[kh,kw,ci,co]*scale[co]  with wi = wo+kw-1;
    out-of-range taps (width zero padding) drop out of the band.  The kh taps
    are stacked along K (major order kh, wi, ci) to match the in-kernel lane
    concat of the three row-shifted padded views.
    """
    KH, KW, Cin, Cout = w_hwio.shape
    w_s = (w_hwio * out_scale.reshape(1, 1, 1, Cout)).astype(jnp.float32)
    kw = jnp.arange(KW)[:, None, None]
    wi = jnp.arange(W)[None, :, None]
    wo = jnp.arange(W)[None, None, :]
    shift = (wi == wo + kw - 1).astype(jnp.float32)            # (KW, W, W)
    wb = jnp.einsum('hkio,kab->haibo', w_s, shift)             # (KH, W, Cin, W, Cout)
    return wb.reshape(KH * W * Cin, W * Cout).astype(jnp.bfloat16)


def _pack_params(bias_a, scale_b, bias_b, W):
    # Tile per-channel vectors across W so they broadcast against (M, W*C).
    return jnp.stack([jnp.tile(bias_a, W),
                      jnp.tile(scale_b, W),
                      jnp.tile(bias_b, W)]).astype(jnp.float32)


@jax.jit
def regionconv_forward(x_nchw, params):
    """Pallas implementation of regionconv.forward.  Input NCHW, output NCHW."""
    x = jnp.transpose(x_nchw, (0, 2, 3, 1)).astype(jnp.float32)   # -> NHWC
    N, H, W, Cin = x.shape
    Cmid = params["w1"].shape[-1]
    Cout = params["w2"].shape[-1]

    s1a, b1a = _fold_bn(*params["bn_conv1"])   # BN inside conv1 block
    s1b, b1b = _fold_bn(*params["bn1"])        # self.bn1
    s2a, b2a = _fold_bn(*params["bn_conv2"])   # BN inside conv2 block
    s2b, b2b = _fold_bn(*params["bn2"])        # self.bn2

    w1s = _banded_weights(params["w1"], s1a, W)     # (3*W*Cin,  W*Cmid) bf16
    w2s = _banded_weights(params["w2"], s2a, W)     # (3*W*Cmid, W*Cout) bf16
    p1 = _pack_params(b1a, s1b, b1b, W)             # (3, W*Cmid) f32
    p2 = _pack_params(b2a, s2b, b2b, W)             # (3, W*Cout) f32

    # bf16 MXU operands (halves input/weight DMA); f32 accumulation in-kernel.
    x2d = x.reshape(N * H, W * Cin).astype(jnp.bfloat16)

    P = N * (H + 1) + 1                             # shared-halo padded rows
    M = P - 2
    flops = 2 * M * (3 * W * Cin * W * Cmid + 3 * W * Cmid * W * Cout)
    bytes_accessed = (2 * (x2d.size + w1s.size + w2s.size)
                      + 4 * (N * H * W * Cout + p1.size + p2.size))

    out2d = pl.pallas_call(
        _make_kernel(N, H),
        out_shape=jax.ShapeDtypeStruct((N * H, W * Cout), jnp.float32),
        grid=(1,),
        in_specs=[
            pl.BlockSpec((N * H, W * Cin), lambda i: (0, 0)),
            pl.BlockSpec((3 * W * Cin, W * Cmid), lambda i: (0, 0)),
            pl.BlockSpec((3, W * Cmid), lambda i: (0, 0)),
            pl.BlockSpec((3 * W * Cmid, W * Cout), lambda i: (0, 0)),
            pl.BlockSpec((3, W * Cout), lambda i: (0, 0)),
        ],
        out_specs=pl.BlockSpec((N * H, W * Cout), lambda i: (0, 0)),
        scratch_shapes=[
            pltpu.VMEM((P, W * Cin), jnp.bfloat16),    # padded input rows
            pltpu.VMEM((P, W * Cmid), jnp.bfloat16),   # padded intermediate
        ],
        compiler_params=pltpu.CompilerParams(
            dimension_semantics=("arbitrary",)),
        cost_estimate=pl.CostEstimate(
            flops=flops, transcendentals=0, bytes_accessed=bytes_accessed),
    )(x2d, w1s, p1, w2s, p2)

    out = out2d.reshape(N, H, W, Cout)
    return jnp.transpose(out, (0, 3, 1, 2))            # NHWC -> NCHW


# ---------------- pure-JAX reference (sanity check) ----------------
def _ref_layer(x_nhwc, w_hwio, s1, b1, s2, b2, final_relu):
    y = lax.conv_general_dilated(
        x_nhwc, w_hwio, window_strides=(1, 1), padding=((1, 1), (1, 1)),
        dimension_numbers=("NHWC", "HWIO", "NHWC"))
    y = y * s1.reshape(1, 1, 1, -1) + b1.reshape(1, 1, 1, -1)
    y = jnp.maximum(y, 0.0)
    y = y * s2.reshape(1, 1, 1, -1) + b2.reshape(1, 1, 1, -1)
    if final_relu:
        y = jnp.maximum(y, 0.0)
    return y


def regionconv_reference(x_nchw, params):
    x = jnp.transpose(x_nchw, (0, 2, 3, 1)).astype(jnp.float32)
    s1a, b1a = _fold_bn(*params["bn_conv1"])
    s1b, b1b = _fold_bn(*params["bn1"])
    h = _ref_layer(x, params["w1"], s1a, b1a, s1b, b1b, True)
    s2a, b2a = _fold_bn(*params["bn_conv2"])
    s2b, b2b = _fold_bn(*params["bn2"])
    y = _ref_layer(h, params["w2"], s2a, b2a, s2b, b2b, False)
    return jnp.transpose(y, (0, 3, 1, 2))


def _make_bn_params(key, c):
    k1, k2, k3, k4 = jax.random.split(key, 4)
    gamma = 1.0 + 0.1 * jax.random.normal(k1, (c,), jnp.float32)
    beta = 0.1 * jax.random.normal(k2, (c,), jnp.float32)
    mean = 0.05 * jax.random.normal(k3, (c,), jnp.float32)
    var = 1.0 + 0.1 * jnp.abs(jax.random.normal(k4, (c,), jnp.float32))
    return gamma, beta, mean, var


if __name__ == "__main__":
    # Small shapes implied by the module: NCHW input, 3x3 convs, pad=1.
    N, in_dim, out_dim, H, W = 2, 4, 8, 16, 16

    key = jax.random.PRNGKey(0)
    kx, kw1, kw2, kb1, kb2, kb3, kb4 = jax.random.split(key, 7)

    x = jax.random.normal(kx, (N, in_dim, H, W), jnp.float32)

    # Conv weights: PyTorch layout (Cout, Cin, kh, kw) -> HWIO for the kernel.
    w1_torch = 0.1 * jax.random.normal(kw1, (in_dim, in_dim, 3, 3), jnp.float32)
    w2_torch = 0.1 * jax.random.normal(kw2, (out_dim, in_dim, 3, 3), jnp.float32)
    w1 = jnp.transpose(w1_torch, (2, 3, 1, 0))  # (3,3,Cin,Cout)
    w2 = jnp.transpose(w2_torch, (2, 3, 1, 0))

    params = {
        "w1": w1,
        "w2": w2,
        "bn_conv1": _make_bn_params(kb1, in_dim),   # BN inside conv1 block
        "bn1": _make_bn_params(kb2, in_dim),        # self.bn1
        "bn_conv2": _make_bn_params(kb3, out_dim),  # BN inside conv2 block
        "bn2": _make_bn_params(kb4, out_dim),       # self.bn2
    }

    out = jax.block_until_ready(regionconv_forward(x, params))
    ref = jax.block_until_ready(regionconv_reference(x, params))

    assert out.shape == (N, out_dim, H, W), out.shape
    # bf16 MXU operands (f32 accumulation) -> relaxed tolerance vs the f32
    # reference, per the performance review's bf16 recommendation.
    assert jnp.allclose(out, ref, atol=5e-2, rtol=5e-2), \
        float(jnp.max(jnp.abs(out - ref)))

    print("KERNEL_OK")
</pallas_src>

<mosaic_0001>
module attributes {stable_mosaic.version = 11 : i64} {
  func.func @kernel(%arg0: i32, %arg1: memref<32x64xbf16, #tpu.memory_space<vmem>>, %arg2: memref<192x64xbf16, #tpu.memory_space<vmem>>, %arg3: memref<3x64xf32, #tpu.memory_space<vmem>>, %arg4: memref<192x128xbf16, #tpu.memory_space<vmem>>, %arg5: memref<3x128xf32, #tpu.memory_space<vmem>>, %arg6: memref<32x128xf32, #tpu.memory_space<vmem>>, %arg7: memref<35x64xbf16, #tpu.memory_space<vmem>>, %arg8: memref<35x64xbf16, #tpu.memory_space<vmem>>) attributes {dimension_semantics = [#tpu.dimension_semantics<arbitrary>], iteration_bounds = array<i64: 1>, scalar_prefetch = 0 : i64, scratch_operands = 2 : i64, tpu.core_type = #tpu.core_type<tc>, window_params = [{pipeline_mode = #tpu.pipeline_mode<synchronous>, transform_indices = @transform_0, window_bounds = array<i64: 32, 64>}, {pipeline_mode = #tpu.pipeline_mode<synchronous>, transform_indices = @transform_1, window_bounds = array<i64: 192, 64>}, {pipeline_mode = #tpu.pipeline_mode<synchronous>, transform_indices = @transform_2, window_bounds = array<i64: 3, 64>}, {pipeline_mode = #tpu.pipeline_mode<synchronous>, transform_indices = @transform_3, window_bounds = array<i64: 192, 128>}, {pipeline_mode = #tpu.pipeline_mode<synchronous>, transform_indices = @transform_4, window_bounds = array<i64: 3, 128>}, {pipeline_mode = #tpu.pipeline_mode<synchronous>, transform_indices = @transform_5, window_bounds = array<i64: 32, 128>}]} {
    %cst = arith.constant 0.000000e+00 : bf16
    %0 = vector.broadcast %cst : bf16 to vector<1x64xbf16>
    %c0 = arith.constant 0 : index
    %c0_0 = arith.constant 0 : index
    %1 = vector.load %arg7[%c0, %c0_0] : memref<35x64xbf16, #tpu.memory_space<vmem>>, vector<1x64xbf16>
    tpu.vector_store %arg7[%c0, %c0_0], %0 {strides = array<i32>} : memref<35x64xbf16, #tpu.memory_space<vmem>>, vector<1x64xbf16>,
    %cst_1 = arith.constant 0.000000e+00 : bf16
    %2 = vector.broadcast %cst_1 : bf16 to vector<1x64xbf16>
    %c17 = arith.constant 17 : index
    %c0_2 = arith.constant 0 : index
    %3 = vector.load %arg7[%c17, %c0_2] : memref<35x64xbf16, #tpu.memory_space<vmem>>, vector<1x64xbf16>
    tpu.vector_store %arg7[%c17, %c0_2], %2 {strides = array<i32>} : memref<35x64xbf16, #tpu.memory_space<vmem>>, vector<1x64xbf16>,
    %cst_3 = arith.constant 0.000000e+00 : bf16
    %4 = vector.broadcast %cst_3 : bf16 to vector<1x64xbf16>
    %c34 = arith.constant 34 : index
    %c0_4 = arith.constant 0 : index
    %5 = vector.load %arg7[%c34, %c0_4] : memref<35x64xbf16, #tpu.memory_space<vmem>>, vector<1x64xbf16>
    tpu.vector_store %arg7[%c34, %c0_4], %4 {strides = array<i32>} : memref<35x64xbf16, #tpu.memory_space<vmem>>, vector<1x64xbf16>,
    %c0_5 = arith.constant 0 : index
    %c0_6 = arith.constant 0 : index
    %6 = vector.load %arg1[%c0_5, %c0_6] : memref<32x64xbf16, #tpu.memory_space<vmem>>, vector<16x64xbf16>
    %c1 = arith.constant 1 : index
    %c0_7 = arith.constant 0 : index
    %7 = vector.load %arg7[%c1, %c0_7] : memref<35x64xbf16, #tpu.memory_space<vmem>>, vector<16x64xbf16>
    tpu.vector_store %arg7[%c1, %c0_7], %6 {strides = array<i32>} : memref<35x64xbf16, #tpu.memory_space<vmem>>, vector<16x64xbf16>,
    %c16 = arith.constant 16 : index
    %c0_8 = arith.constant 0 : index
    %8 = vector.load %arg1[%c16, %c0_8] : memref<32x64xbf16, #tpu.memory_space<vmem>>, vector<16x64xbf16>
    %c18 = arith.constant 18 : index
    %c0_9 = arith.constant 0 : index
    %9 = vector.load %arg7[%c18, %c0_9] : memref<35x64xbf16, #tpu.memory_space<vmem>>, vector<16x64xbf16>
    tpu.vector_store %arg7[%c18, %c0_9], %8 {strides = array<i32>} : memref<35x64xbf16, #tpu.memory_space<vmem>>, vector<16x64xbf16>,
    %c0_10 = arith.constant 0 : index
    %c0_11 = arith.constant 0 : index
    %10 = vector.load %arg7[%c0_10, %c0_11] : memref<35x64xbf16, #tpu.memory_space<vmem>>, vector<33x64xbf16>
    %c1_12 = arith.constant 1 : index
    %c0_13 = arith.constant 0 : index
    %11 = vector.load %arg7[%c1_12, %c0_13] : memref<35x64xbf16, #tpu.memory_space<vmem>>, vector<33x64xbf16>
    %c2 = arith.constant 2 : index
    %c0_14 = arith.constant 0 : index
    %12 = vector.load %arg7[%c2, %c0_14] : memref<35x64xbf16, #tpu.memory_space<vmem>>, vector<33x64xbf16>
    %13 = tpu.concatenate %10, %11, %12 in 1 : vector<33x64xbf16>, vector<33x64xbf16>, vector<33x64xbf16> -> vector<33x192xbf16>
    %c0_15 = arith.constant 0 : index
    %c0_16 = arith.constant 0 : index
    %14 = vector.load %arg2[%c0_15, %c0_16] : memref<192x64xbf16, #tpu.memory_space<vmem>>, vector<192x64xbf16>
    %cst_17 = arith.constant dense<0.000000e+00> : vector<33x64xf32>
    %15 = tpu.matmul %13, %14, %cst_17 {dimension_numbers = #tpu.dot_dimension_numbers<[1], [0], [0], [1], [0, 0, 1, 1], [], []>} : vector<33x192xbf16>, vector<192x64xbf16>, vector<33x64xf32> -> vector<33x64xf32>
    %c0_18 = arith.constant 0 : index
    %c0_19 = arith.constant 0 : index
    %16 = vector.load %arg3[%c0_18, %c0_19] : memref<3x64xf32, #tpu.memory_space<vmem>>, vector<1x64xf32>
    %17 = vector.broadcast %16 : vector<1x64xf32> to vector<33x64xf32>
    %18 = arith.addf %15, %17 : vector<33x64xf32>
    %cst_20 = arith.constant 0.000000e+00 : f32
    %19 = vector.broadcast %cst_20 : f32 to vector<33x64xf32>
    %20 = arith.maximumf %18, %19 : vector<33x64xf32>
    %c1_21 = arith.constant 1 : index
    %c0_22 = arith.constant 0 : index
    %21 = vector.load %arg3[%c1_21, %c0_22] : memref<3x64xf32, #tpu.memory_space<vmem>>, vector<1x64xf32>
    %22 = vector.broadcast %21 : vector<1x64xf32> to vector<33x64xf32>
    %23 = arith.mulf %20, %22 : vector<33x64xf32>
    %c2_23 = arith.constant 2 : index
    %c0_24 = arith.constant 0 : index
    %24 = vector.load %arg3[%c2_23, %c0_24] : memref<3x64xf32, #tpu.memory_space<vmem>>, vector<1x64xf32>
    %25 = vector.broadcast %24 : vector<1x64xf32> to vector<33x64xf32>
    %26 = arith.addf %23, %25 : vector<33x64xf32>
    %cst_25 = arith.constant 0.000000e+00 : f32
    %27 = vector.broadcast %cst_25 : f32 to vector<33x64xf32>
    %28 = arith.maximumf %26, %27 : vector<33x64xf32>
    %29 = arith.truncf %28 : vector<33x64xf32> to vector<33x64xbf16>
    %c1_26 = arith.constant 1 : index
    %c0_27 = arith.constant 0 : index
    %30 = vector.load %arg8[%c1_26, %c0_27] : memref<35x64xbf16, #tpu.memory_space<vmem>>, vector<33x64xbf16>
    tpu.vector_store %arg8[%c1_26, %c0_27], %29 {strides = array<i32>} : memref<35x64xbf16, #tpu.memory_space<vmem>>, vector<33x64xbf16>,
    %cst_28 = arith.constant 0.000000e+00 : bf16
    %31 = vector.broadcast %cst_28 : bf16 to vector<1x64xbf16>
    %c0_29 = arith.constant 0 : index
    %c0_30 = arith.constant 0 : index
    %32 = vector.load %arg8[%c0_29, %c0_30] : memref<35x64xbf16, #tpu.memory_space<vmem>>, vector<1x64xbf16>
    tpu.vector_store %arg8[%c0_29, %c0_30], %31 {strides = array<i32>} : memref<35x64xbf16, #tpu.memory_space<vmem>>, vector<1x64xbf16>,
    %cst_31 = arith.constant 0.000000e+00 : bf16
    %33 = vector.broadcast %cst_31 : bf16 to vector<1x64xbf16>
    %c17_32 = arith.constant 17 : index
    %c0_33 = arith.constant 0 : index
    %34 = vector.load %arg8[%c17_32, %c0_33] : memref<35x64xbf16, #tpu.memory_space<vmem>>, vector<1x64xbf16>
    tpu.vector_store %arg8[%c17_32, %c0_33], %33 {strides = array<i32>} : memref<35x64xbf16, #tpu.memory_space<vmem>>, vector<1x64xbf16>,
    %cst_34 = arith.constant 0.000000e+00 : bf16
    %35 = vector.broadcast %cst_34 : bf16 to vector<1x64xbf16>
    %c34_35 = arith.constant 34 : index
    %c0_36 = arith.constant 0 : index
    %36 = vector.load %arg8[%c34_35, %c0_36] : memref<35x64xbf16, #tpu.memory_space<vmem>>, vector<1x64xbf16>
    tpu.vector_store %arg8[%c34_35, %c0_36], %35 {strides = array<i32>} : memref<35x64xbf16, #tpu.memory_space<vmem>>, vector<1x64xbf16>,
    %c0_37 = arith.constant 0 : index
    %c0_38 = arith.constant 0 : index
    %37 = vector.load %arg8[%c0_37, %c0_38] : memref<35x64xbf16, #tpu.memory_space<vmem>>, vector<33x64xbf16>
    %c1_39 = arith.constant 1 : index
    %c0_40 = arith.constant 0 : index
    %38 = vector.load %arg8[%c1_39, %c0_40] : memref<35x64xbf16, #tpu.memory_space<vmem>>, vector<33x64xbf16>
    %c2_41 = arith.constant 2 : index
    %c0_42 = arith.constant 0 : index
    %39 = vector.load %arg8[%c2_41, %c0_42] : memref<35x64xbf16, #tpu.memory_space<vmem>>, vector<33x64xbf16>
    %40 = tpu.concatenate %37, %38, %39 in 1 : vector<33x64xbf16>, vector<33x64xbf16>, vector<33x64xbf16> -> vector<33x192xbf16>
    %c0_43 = arith.constant 0 : index
    %c0_44 = arith.constant 0 : index
    %41 = vector.load %arg4[%c0_43, %c0_44] : memref<192x128xbf16, #tpu.memory_space<vmem>>, vector<192x128xbf16>
    %cst_45 = arith.constant dense<0.000000e+00> : vector<33x128xf32>
    %42 = tpu.matmul %40, %41, %cst_45 {dimension_numbers = #tpu.dot_dimension_numbers<[1], [0], [0], [1], [0, 0, 1, 1], [], []>} : vector<33x192xbf16>, vector<192x128xbf16>, vector<33x128xf32> -> vector<33x128xf32>
    %c0_46 = arith.constant 0 : index
    %c0_47 = arith.constant 0 : index
    %43 = vector.load %arg5[%c0_46, %c0_47] : memref<3x128xf32, #tpu.memory_space<vmem>>, vector<1x128xf32>
    %44 = vector.broadcast %43 : vector<1x128xf32> to vector<33x128xf32>
    %45 = arith.addf %42, %44 : vector<33x128xf32>
    %cst_48 = arith.constant 0.000000e+00 : f32
    %46 = vector.broadcast %cst_48 : f32 to vector<33x128xf32>
    %47 = arith.maximumf %45, %46 : vector<33x128xf32>
    %c1_49 = arith.constant 1 : index
    %c0_50 = arith.constant 0 : index
    %48 = vector.load %arg5[%c1_49, %c0_50] : memref<3x128xf32, #tpu.memory_space<vmem>>, vector<1x128xf32>
    %49 = vector.broadcast %48 : vector<1x128xf32> to vector<33x128xf32>
    %50 = arith.mulf %47, %49 : vector<33x128xf32>
    %c2_51 = arith.constant 2 : index
    %c0_52 = arith.constant 0 : index
    %51 = vector.load %arg5[%c2_51, %c0_52] : memref<3x128xf32, #tpu.memory_space<vmem>>, vector<1x128xf32>
    %52 = vector.broadcast %51 : vector<1x128xf32> to vector<33x128xf32>
    %53 = arith.addf %50, %52 : vector<33x128xf32>
    %54 = vector.extract_strided_slice %53 {offsets = [0, 0], sizes = [16, 128], strides = [1, 1]} : vector<33x128xf32> to vector<16x128xf32>
    %c0_53 = arith.constant 0 : index
    %c0_54 = arith.constant 0 : index
    %55 = vector.load %arg6[%c0_53, %c0_54] : memref<32x128xf32, #tpu.memory_space<vmem>>, vector<16x128xf32>
    tpu.vector_store %arg6[%c0_53, %c0_54], %54 {strides = array<i32>} : memref<32x128xf32, #tpu.memory_space<vmem>>, vector<16x128xf32>,
    %56 = vector.extract_strided_slice %53 {offsets = [17, 0], sizes = [16, 128], strides = [1, 1]} : vector<33x128xf32> to vector<16x128xf32>
    %c16_55 = arith.constant 16 : index
    %c0_56 = arith.constant 0 : index
    %57 = vector.load %arg6[%c16_55, %c0_56] : memref<32x128xf32, #tpu.memory_space<vmem>>, vector<16x128xf32>
    tpu.vector_store %arg6[%c16_55, %c0_56], %56 {strides = array<i32>} : memref<32x128xf32, #tpu.memory_space<vmem>>, vector<16x128xf32>,
    return
  }
  func.func @transform_0(%arg0: i32) -> (i32, i32) {
    %c0_i32 = arith.constant 0 : i32
    %c0_i32_0 = arith.constant 0 : i32
    %c0_i32_1 = arith.constant 0 : i32
    return %c0_i32, %c0_i32_0 : i32, i32
  }
  func.func @transform_1(%arg0: i32) -> (i32, i32) {
    %c0_i32 = arith.constant 0 : i32
    %c0_i32_0 = arith.constant 0 : i32
    %c0_i32_1 = arith.constant 0 : i32
    return %c0_i32, %c0_i32_0 : i32, i32
  }
  func.func @transform_2(%arg0: i32) -> (i32, i32) {
    %c0_i32 = arith.constant 0 : i32
    %c0_i32_0 = arith.constant 0 : i32
    %c0_i32_1 = arith.constant 0 : i32
    return %c0_i32, %c0_i32_0 : i32, i32
  }
  func.func @transform_3(%arg0: i32) -> (i32, i32) {
    %c0_i32 = arith.constant 0 : i32
    %c0_i32_0 = arith.constant 0 : i32
    %c0_i32_1 = arith.constant 0 : i32
    return %c0_i32, %c0_i32_0 : i32, i32
  }
  func.func @transform_4(%arg0: i32) -> (i32, i32) {
    %c0_i32 = arith.constant 0 : i32
    %c0_i32_0 = arith.constant 0 : i32
    %c0_i32_1 = arith.constant 0 : i32
    return %c0_i32, %c0_i32_0 : i32, i32
  }
  func.func @transform_5(%arg0: i32) -> (i32, i32) {
    %c0_i32 = arith.constant 0 : i32
    %c0_i32_0 = arith.constant 0 : i32
    %c0_i32_1 = arith.constant 0 : i32
    return %c0_i32, %c0_i32_0 : i32, i32
  }
}

</mosaic_0001>

<llo_original>
// kernel: tile.33
$region0: #{tile.33}
  #allocation0 [shape = 's32[1]{0}', space=sflag, size = 0x4, scoped, tag = 'scoped memory for tile.33']
  %s0 = inlined_call_operand.vmem [shape: f32[4], index: 0, kind: input, shape index: {}]
  %s1 = inlined_call_operand.vmem [shape: f32[16,4], index: 1, kind: output, shape index: {}]
  // Predicated region
  $region2: #{tile.33} parent=0 // pred_check
    _
  $region3: #{tile.33} parent=0 // pred_check_branch
    %3 = sbr.rel (0) target = $region5
  $region4: #{tile.33} parent=0 // pred_region
    _
  $region5: #{tile.33} parent=0 // pred_fallthru
    _
  %v4 = vld [vmem:[%s0] ss:$0 sm:$0xff]
  %5 = vst [vmem:[%s1] sm:$0xff] %v4
  %s6 = scalar_lea.vmem %s1, 8
  %7 = vst [vmem:[%s6] sm:$0xff] %v4

// kernel: tile.42
$region0: #{tile.42}
  %s0 = inlined_call_operand.vmem [shape: f32[16,4], index: 0, kind: input, shape index: {}]
  %s1 = inlined_call_operand.vmem [shape: f32[1,64], index: 1, kind: output, shape index: {}]
  $region1: #{tile.42} parent=0
    #allocation0 [shape = 'u8[4096]{0}', space=vmem, size = 0x1000, scoped, tag = 'scoped mem for output reshape']
    %v2 = vld [vmem:[%s0] sm:$0x1]
    %vm3 = vcmask 31744
    %4 = vst.msk [vmem:[#allocation0] sm:$0x1] %vm3, %v2
    %s5 = scalar_lea.vmem %s0, 15
    %v6 = vld [vmem:[%s5] sm:$0x1]
    %7 = vrot.lane.b32.xlu0 %v6, 60
    %v8 = vpop.permute.xlu0 %7
    %vm9 = vcmask 523744
    %10 = vst.msk [vmem:[#allocation0] sm:$0x1] %vm9, %v8
    %s11 = scalar_lea.vmem %s0, 14
    %v12 = vld [vmem:[%s11] sm:$0x1]
    %13 = vrot.lane.b32.xlu0 %v12, 56
    %v14 = vpop.permute.xlu0 %13
    %vm15 = vcmask 490944
    %16 = vst.msk [vmem:[#allocation0] sm:$0x1] %vm15, %v14
    %s17 = scalar_lea.vmem %s0, 13
    %v18 = vld [vmem:[%s17] sm:$0x1]
    %19 = vrot.lane.b32.xlu0 %v18, 52
    %v20 = vpop.permute.xlu0 %19
    %vm21 = vcmask 458144
    %22 = vst.msk [vmem:[#allocation0] sm:$0x1] %vm21, %v20
    %s23 = scalar_lea.vmem %s0, 12
    %v24 = vld [vmem:[%s23] sm:$0x1]
    %25 = vrot.lane.b32.xlu0 %v24, 48
    %v26 = vpop.permute.xlu0 %25
    %vm27 = vcmask 425344
    %28 = vst.msk [vmem:[#allocation0] sm:$0x1] %vm27, %v26
    %s29 = scalar_lea.vmem %s0, 11
    %v30 = vld [vmem:[%s29] sm:$0x1]
    %31 = vrot.lane.b32.xlu0 %v30, 44
    %v32 = vpop.permute.xlu0 %31
    %vm33 = vcmask 392544
    %34 = vst.msk [vmem:[#allocation0] sm:$0x1] %vm33, %v32
    %s35 = scalar_lea.vmem %s0, 10
    %v36 = vld [vmem:[%s35] sm:$0x1]
    %37 = vrot.lane.b32.xlu0 %v36, 40
    %v38 = vpop.permute.xlu0 %37
    %vm39 = vcmask 359744
    %40 = vst.msk [vmem:[#allocation0] sm:$0x1] %vm39, %v38
    %s41 = scalar_lea.vmem %s0, 9
    %v42 = vld [vmem:[%s41] sm:$0x1]
    %43 = vrot.lane.b32.xlu0 %v42, 36
    %v44 = vpop.permute.xlu0 %43
    %vm45 = vcmask 326944
    %46 = vst.msk [vmem:[#allocation0] sm:$0x1] %vm45, %v44
    %s47 = scalar_lea.vmem %s0, 8
    %v48 = vld [vmem:[%s47] sm:$0x1]
    %49 = vrot.lane.b32.xlu0 %v48, 32
    %v50 = vpop.permute.xlu0 %49
    %vm51 = vcmask 294144
    %52 = vst.msk [vmem:[#allocation0] sm:$0x1] %vm51, %v50
    %s53 = scalar_lea.vmem %s0, 7
    %v54 = vld [vmem:[%s53] sm:$0x1]
    %55 = vrot.lane.b32.xlu0 %v54, 28
    %v56 = vpop.permute.xlu0 %55
    %vm57 = vcmask 261344
    %58 = vst.msk [vmem:[#allocation0] sm:$0x1] %vm57, %v56
    %s59 = scalar_lea.vmem %s0, 6
    %v60 = vld [vmem:[%s59] sm:$0x1]
    %61 = vrot.lane.b32.xlu0 %v60, 24
    %v62 = vpop.permute.xlu0 %61
    %vm63 = vcmask 228544
    %64 = vst.msk [vmem:[#allocation0] sm:$0x1] %vm63, %v62
    %s65 = scalar_lea.vmem %s0, 5
    %v66 = vld [vmem:[%s65] sm:$0x1]
    %67 = vrot.lane.b32.xlu0 %v66, 20
    %v68 = vpop.permute.xlu0 %67
    %vm69 = vcmask 195744
    %70 = vst.msk [vmem:[#allocation0] sm:$0x1] %vm69, %v68
    %s71 = scalar_lea.vmem %s0, 4
    %v72 = vld [vmem:[%s71] sm:$0x1]
    %73 = vrot.lane.b32.xlu0 %v72, 16
    %v74 = vpop.permute.xlu0 %73
    %vm75 = vcmask 162944
    %76 = vst.msk [vmem:[#allocation0] sm:$0x1] %vm75, %v74
    %s77 = scalar_lea.vmem %s0, 3
    %v78 = vld [vmem:[%s77] sm:$0x1]
    %79 = vrot.lane.b32.xlu0 %v78, 12
    %v80 = vpop.permute.xlu0 %79
    %vm81 = vcmask 130144
    %82 = vst.msk [vmem:[#allocation0] sm:$0x1] %vm81, %v80
    %s83 = scalar_lea.vmem %s0, 2
    %v84 = vld [vmem:[%s83] sm:$0x1]
    %85 = vrot.lane.b32.xlu0 %v84, 8
    %v86 = vpop.permute.xlu0 %85
    %vm87 = vcmask 97344
    %88 = vst.msk [vmem:[#allocation0] sm:$0x1] %vm87, %v86
    %s89 = scalar_lea.vmem %s0, 1
    %v90 = vld [vmem:[%s89] sm:$0x1]
    %91 = vrot.lane.b32.xlu0 %v90, 4
    %v92 = vpop.permute.xlu0 %91
    %vm93 = vcmask 64544
    %94 = vst.msk [vmem:[#allocation0] sm:$0x1] %vm93, %v92
    %s96 = ssub.s32 2, 1
    %v97 = vld [vmem:[#allocation0] sm:%s96]
    %s99 = ssub.s32 2, 1
    %100 = vst [vmem:[%s1] sm:%s99] %v97

// kernel: tile.48
$region0: #{tile.48}
  #allocation0 [shape = 's32[1]{0}', space=sflag, size = 0x4, scoped, tag = 'scoped memory for tile.48']
  %s0 = inlined_call_operand.vmem [shape: f32[8], index: 0, kind: input, shape index: {}]
  %s1 = inlined_call_operand.vmem [shape: f32[16,8], index: 1, kind: output, shape index: {}]
  // Predicated region
  $region2: #{tile.48} parent=0 // pred_check
    _
  $region3: #{tile.48} parent=0 // pred_check_branch
    %3 = sbr.rel (0) target = $region5
  $region4: #{tile.48} parent=0 // pred_region
    _
  $region5: #{tile.48} parent=0 // pred_fallthru
    _
  %v4 = vld [vmem:[%s0] ss:$0 sm:$0xff]
  %5 = vst [vmem:[%s1] sm:$0xff] %v4
  %s6 = scalar_lea.vmem %s1, 8
  %7 = vst [vmem:[%s6] sm:$0xff] %v4

// kernel: tile.57
$region0: #{tile.57}
  %s0 = inlined_call_operand.vmem [shape: f32[16,8], index: 0, kind: input, shape index: {}]
  %s1 = inlined_call_operand.vmem [shape: f32[1,128], index: 1, kind: output, shape index: {}]
  $region1: #{tile.57} parent=0
    #allocation0 [shape = 'u8[4096]{0}', space=vmem, size = 0x1000, scoped, tag = 'scoped mem for output reshape']
    %v2 = vld [vmem:[%s0] sm:$0x1]
    %vm3 = vcmask 64512
    %4 = vst.msk [vmem:[#allocation0] sm:$0x1] %vm3, %v2
    %s5 = scalar_lea.vmem %s0, 15
    %v6 = vld [vmem:[%s5] sm:$0x1]
    %7 = vrot.lane.b32.xlu0 %v6, 120
    %v8 = vpop.permute.xlu0 %7
    %vm9 = vcmask 1048512
    %10 = vst.msk [vmem:[#allocation0] sm:$0x1] %vm9, %v8
    %s11 = scalar_lea.vmem %s0, 14
    %v12 = vld [vmem:[%s11] sm:$0x1]
    %13 = vrot.lane.b32.xlu0 %v12, 112
    %v14 = vpop.permute.xlu0 %13
    %vm15 = vcmask 982912
    %16 = vst.msk [vmem:[#allocation0] sm:$0x1] %vm15, %v14
    %s17 = scalar_lea.vmem %s0, 13
    %v18 = vld [vmem:[%s17] sm:$0x1]
    %19 = vrot.lane.b32.xlu0 %v18, 104
    %v20 = vpop.permute.xlu0 %19
    %vm21 = vcmask 917312
    %22 = vst.msk [vmem:[#allocation0] sm:$0x1] %vm21, %v20
    %s23 = scalar_lea.vmem %s0, 12
    %v24 = vld [vmem:[%s23] sm:$0x1]
    %25 = vrot.lane.b32.xlu0 %v24, 96
    %v26 = vpop.permute.xlu0 %25
    %vm27 = vcmask 851712
    %28 = vst.msk [vmem:[#allocation0] sm:$0x1] %vm27, %v26
    %s29 = scalar_lea.vmem %s0, 11
    %v30 = vld [vmem:[%s29] sm:$0x1]
    %31 = vrot.lane.b32.xlu0 %v30, 88
    %v32 = vpop.permute.xlu0 %31
    %vm33 = vcmask 786112
    %34 = vst.msk [vmem:[#allocation0] sm:$0x1] %vm33, %v32
    %s35 = scalar_lea.vmem %s0, 10
    %v36 = vld [vmem:[%s35] sm:$0x1]
    %37 = vrot.lane.b32.xlu0 %v36, 80
    %v38 = vpop.permute.xlu0 %37
    %vm39 = vcmask 720512
    %40 = vst.msk [vmem:[#allocation0] sm:$0x1] %vm39, %v38
    %s41 = scalar_lea.vmem %s0, 9
    %v42 = vld [vmem:[%s41] sm:$0x1]
    %43 = vrot.lane.b32.xlu0 %v42, 72
    %v44 = vpop.permute.xlu0 %43
    %vm45 = vcmask 654912
    %46 = vst.msk [vmem:[#allocation0] sm:$0x1] %vm45, %v44
    %s47 = scalar_lea.vmem %s0, 8
    %v48 = vld [vmem:[%s47] sm:$0x1]
    %49 = vrot.lane.b32.xlu0 %v48, 64
    %v50 = vpop.permute.xlu0 %49
    %vm51 = vcmask 589312
    %52 = vst.msk [vmem:[#allocation0] sm:$0x1] %vm51, %v50
    %s53 = scalar_lea.vmem %s0, 7
    %v54 = vld [vmem:[%s53] sm:$0x1]
    %55 = vrot.lane.b32.xlu0 %v54, 56
    %v56 = vpop.permute.xlu0 %55
    %vm57 = vcmask 523712
    %58 = vst.msk [vmem:[#allocation0] sm:$0x1] %vm57, %v56
    %s59 = scalar_lea.vmem %s0, 6
    %v60 = vld [vmem:[%s59] sm:$0x1]
    %61 = vrot.lane.b32.xlu0 %v60, 48
    %v62 = vpop.permute.xlu0 %61
    %vm63 = vcmask 458112
    %64 = vst.msk [vmem:[#allocation0] sm:$0x1] %vm63, %v62
    %s65 = scalar_lea.vmem %s0, 5
    %v66 = vld [vmem:[%s65] sm:$0x1]
    %67 = vrot.lane.b32.xlu0 %v66, 40
    %v68 = vpop.permute.xlu0 %67
    %vm69 = vcmask 392512
    %70 = vst.msk [vmem:[#allocation0] sm:$0x1] %vm69, %v68
    %s71 = scalar_lea.vmem %s0, 4
    %v72 = vld [vmem:[%s71] sm:$0x1]
    %73 = vrot.lane.b32.xlu0 %v72, 32
    %v74 = vpop.permute.xlu0 %73
    %vm75 = vcmask 326912
    %76 = vst.msk [vmem:[#allocation0] sm:$0x1] %vm75, %v74
    %s77 = scalar_lea.vmem %s0, 3
    %v78 = vld [vmem:[%s77] sm:$0x1]
    %79 = vrot.lane.b32.xlu0 %v78, 24
    %v80 = vpop.permute.xlu0 %79
    %vm81 = vcmask 261312
    %82 = vst.msk [vmem:[#allocation0] sm:$0x1] %vm81, %v80
    %s83 = scalar_lea.vmem %s0, 2
    %v84 = vld [vmem:[%s83] sm:$0x1]
    %85 = vrot.lane.b32.xlu0 %v84, 16
    %v86 = vpop.permute.xlu0 %85
    %vm87 = vcmask 195712
    %88 = vst.msk [vmem:[#allocation0] sm:$0x1] %vm87, %v86
    %s89 = scalar_lea.vmem %s0, 1
    %v90 = vld [vmem:[%s89] sm:$0x1]
    %91 = vrot.lane.b32.xlu0 %v90, 8
    %v92 = vpop.permute.xlu0 %91
    %vm93 = vcmask 130112
    %94 = vst.msk [vmem:[#allocation0] sm:$0x1] %vm93, %v92
    %s96 = ssub.s32 2, 1
    %v97 = vld [vmem:[#allocation0] sm:%s96]
    %s99 = ssub.s32 2, 1
    %100 = vst [vmem:[%s1] sm:%s99] %v97

// kernel: regionconv_forward.1
$region0: #{regionconv_forward.1}
  #allocation0 [shape = 'u32[]', space=smem, size = 0x4, offset = 0x4, fixed_abs, tag = 'smem constant byte address 0x4 - core index']
  #allocation1 [shape = 'u32[72,128]{1,0:T(1,128)}', space=vmem, size = 0x9000, scoped, tag = 'internal scratch']
  #allocation2 [shape = 'bf16[35,64]{1,0:T(8,128)(2,1)}', space=vmem, size = 0x2800, scoped, tag = 'scratch operand']
  #allocation3 [shape = 'bf16[35,64]{1,0:T(8,128)(2,1)}', space=vmem, size = 0x2800, scoped, tag = 'scratch operand']
  %s0 = inlined_call_operand.vmem [shape: bf16[32,64], index: 0, kind: input, shape index: {}]
  %s1 = inlined_call_operand.vmem [shape: bf16[192,64], index: 1, kind: input, shape index: {}]
  %s2 = inlined_call_operand.vmem [shape: f32[3,64], index: 2, kind: input, shape index: {}]
  %s3 = inlined_call_operand.vmem [shape: bf16[192,128], index: 3, kind: input, shape index: {}]
  %s4 = inlined_call_operand.vmem [shape: f32[3,128], index: 4, kind: input, shape index: {}]
  %s5 = inlined_call_operand.vmem [shape: f32[32,128], index: 5, kind: output, shape index: {}]
  %s6 = sld [smem:[#allocation0]]
  $region30: #{regionconv_forward.1} parent=0
    _
  %s8 = ssub.s32 1, %s6
  %s9 = scalar_select 0, %s8, %s6
  // Predicated region
  $region2: #{regionconv_forward.1} parent=0 // pred_check
    _
  $region3: #{regionconv_forward.1} parent=0 // pred_check_branch
    %11 = sbr.rel (0) target = $region5
  $region4: #{regionconv_forward.1} parent=0 // pred_region
    _
  $region5: #{regionconv_forward.1} parent=0 // pred_fallthru
    _
  // Predicated region
  $region6: #{regionconv_forward.1} parent=0 // pred_check
    _
  $region7: #{regionconv_forward.1} parent=0 // pred_check_branch
    %13 = sbr.rel (0) target = $region9
  $region8: #{regionconv_forward.1} parent=0 // pred_region
    _
  $region9: #{regionconv_forward.1} parent=0 // pred_fallthru
    _
  // Predicated region
  $region10: #{regionconv_forward.1} parent=0 // pred_check
    _
  $region11: #{regionconv_forward.1} parent=0 // pred_check_branch
    %15 = sbr.rel (0) target = $region13
  $region12: #{regionconv_forward.1} parent=0 // pred_region
    _
  $region13: #{regionconv_forward.1} parent=0 // pred_fallthru
    _
  // Predicated region
  $region14: #{regionconv_forward.1} parent=0 // pred_check
    _
  $region15: #{regionconv_forward.1} parent=0 // pred_check_branch
    %17 = sbr.rel (0) target = $region17
  $region16: #{regionconv_forward.1} parent=0 // pred_region
    _
  $region17: #{regionconv_forward.1} parent=0 // pred_fallthru
    _
  // Predicated region
  $region18: #{regionconv_forward.1} parent=0 // pred_check
    _
  $region19: #{regionconv_forward.1} parent=0 // pred_check_branch
    %19 = sbr.rel (0) target = $region21
  $region20: #{regionconv_forward.1} parent=0 // pred_region
    _
  $region21: #{regionconv_forward.1} parent=0 // pred_fallthru
    _
  %vm21 = vcmask 516096
  %vm22 = vsmask.f32 256
  %vm23 = vmand %vm21, %vm22
  %v24 = vld [vmem:[#allocation2] sm:$0x1]
  %v25 = vsel %vm23, 0, %v24
  %26 = vst [vmem:[#allocation2] sm:$0x1] %v25
  %vm27 = vsmask.f32 7938
  %vm28 = vmand %vm21, %vm27
  %v29 = vld [vmem:[#allocation2 + $0x8] sm:$0x1]
  %v30 = vsel %vm28, 0, %v29
  %31 = vst [vmem:[#allocation2 + $0x8] sm:$0x1] %v30
  %vm32 = vcmask 517121
  %vm33 = vsmask.f32 1280
  %vm34 = vmand %vm32, %vm33
  %v35 = vld [vmem:[#allocation2 + $0x10] sm:$0x2]
  %v36 = vsel %vm34, 0, %v35
  %37 = vst [vmem:[#allocation2 + $0x10] sm:$0x2] %v36
  %v38 = vld [vmem:[%s0] sm:$0xf]
  %v39 = vld [vmem:[%s0 + $0x4] sm:$0xf]
  %vm40 = vsmask.f32 4368
  %vm41 = vmor %vm22, %vm40
  %v43 = vshrl.u32 %v38, 16
  %v45 = vrot.slane %v43, 7
  %v46 = vshll.u32 %v38, 16
  %v48 = vor.u32 %v45, %v46
  %v49 = vrot.slane %v45, 4
  %v51 = vshrl.u32 %v39, 16
  %v53 = vrot.slane %v51, 7
  %v54 = vshll.u32 %v39, 16
  %v56 = vor.u32 %v53, %v54
  %v57 = vsel %vm41, %v49, %v56
  %v58 = vrot.slane %v53, 4
  %vm62 = vcmask 519168
  %vm63 = vmand %vm62, %vm27
  %v64 = vld [vmem:[#allocation2] sm:$0xf]
  %v65 = vsel %vm63, %v48, %v64
  %66 = vst [vmem:[#allocation2] sm:$0xf] %v65
  %vm67 = vcmask 519168
  %68 = vst.msk [vmem:[#allocation2 + $0x4] sm:$0xf] %vm67, %v57
  %v69 = vld [vmem:[#allocation2 + $0x8] sm:$0x1]
  %v70 = vsel %vm23, %v58, %v69
  %71 = vst [vmem:[#allocation2 + $0x8] sm:$0x1] %v70
  %v72 = vld [vmem:[%s0 + $0x8] sm:$0xf]
  %v73 = vld [vmem:[%s0 + $0xc] sm:$0xf]
  %vm76 = vcmask 1040384
  %vm77 = vcmask 1044484
  %vm78 = vmor %vm76, %vm77
  %v79 = vrot.slane %v72, 7
  %v80 = vrot.slane %v79, 4
  %v81 = vrot.slane %v73, 7
  %v82 = vsel %vm78, %v80, %v81
  %v83 = vrot.slane %v81, 4
  %vm87 = vcmask 519169
  %88 = vst.msk [vmem:[#allocation2 + $0x8] sm:$0xe] %vm87, %v79
  %89 = vst.msk [vmem:[#allocation2 + $0xc] sm:$0xf] %vm67, %v82
  %vm90 = vcmask 516096
  %91 = vst.msk [vmem:[#allocation2 + $0x10] sm:$0x1] %vm90, %v83
  %v92 = vld [vmem:[#allocation2] sm:$0xf]
  %v93 = vld [vmem:[#allocation2 + $0x4] sm:$0xf]
  %v94 = vld [vmem:[#allocation2 + $0x8] sm:$0xf]
  %v95 = vld [vmem:[#allocation2 + $0xc] sm:$0xf]
  %v96 = vld [vmem:[#allocation2 + $0x10] sm:$0x1]
  %v97 = vld [vmem:[#allocation2] sm:$0xe]
  %v98 = vld [vmem:[#allocation2 + $0x10] sm:$0x3]
  %v104 = vunpack.c.l.b16 %v92
  %v105 = vunpack.c.l.b16 %v93
  %v106 = vunpack.c.l.b16 %v94
  %v107 = vunpack.c.l.b16 %v95
  %v108 = vunpack.c.l.b16 %v96
  %v109 = vpack.c.b16 %v105, %v104
  %v110 = vpack.c.b16 %v107, %v106
  %v111 = vpack.c.b16 %v108, %v108
  %vm112 = vsmask.f32 7424
  %v114 = vshrl.u32 %v109, 16
  %v116 = vshll.u32 %v109, 16
  %v118 = vrot.slane %v116, 1
  %v119 = vor.u32 %v114, %v118
  %v121 = vshll.u32 %v110, 16
  %v123 = vrot.slane %v121, 1
  %v124 = vsel %vm112, %v119, %v123
  %v125 = vshrl.u32 %v110, 16
  %v127 = vor.u32 %v125, %v123
  %v129 = vshll.u32 %v111, 16
  %v131 = vrot.slane %v129, 1
  %v132 = vsel %vm112, %v127, %v131
  %v133 = vshrl.u32 %v111, 16
  %135 = vrot.lane.b32.xlu0 %v124, 64
  %v136 = vpop.permute.xlu0 %135
  %137 = vrot.lane.b32.xlu0 %v132, 64
  %v138 = vpop.permute.xlu0 %137
  %139 = vrot.lane.b32.xlu0 %v133, 64
  %v140 = vpop.permute.xlu0 %139
  %v143 = vunpack.c.l.b16 %v97
  %v144 = vunpack.c.l.b16 %v98
  %v145 = vpack.c.b16 %v105, %v143
  %v146 = vpack.c.b16 %v144, %v144
  %vm147 = vcmask 1046528
  %v148 = vrot.slane %v145, 1
  %v149 = vrot.slane %v110, 1
  %v150 = vsel %vm147, %v148, %v149
  %v151 = vrot.slane %v146, 1
  %v152 = vsel %vm147, %v149, %v151
  %vm153 = vcmask 523264
  %v155 = vsel %vm153, %v109, %v136
  %v158 = vsel %vm153, %v110, %v138
  %v161 = vsel %vm153, %v111, %v140
  %v163 = vld [vmem:[%s1] sm:$0xf]
  %v164 = vld [vmem:[%s1 + $0x4] sm:$0xf]
  %v165 = vld [vmem:[%s1 + $0x8] sm:$0xf]
  %v166 = vld [vmem:[%s1 + $0xc] sm:$0xf]
  %v167 = vld [vmem:[%s1 + $0x10] sm:$0xf]
  %v168 = vld [vmem:[%s1 + $0x14] sm:$0xf]
  %v169 = vld [vmem:[%s1 + $0x18] sm:$0xf]
  %v170 = vld [vmem:[%s1 + $0x1c] sm:$0xf]
  %v171 = vld [vmem:[%s1 + $0x20] sm:$0xf]
  %v172 = vld [vmem:[%s1 + $0x24] sm:$0xf]
  %v173 = vld [vmem:[%s1 + $0x28] sm:$0xf]
  %v174 = vld [vmem:[%s1 + $0x2c] sm:$0xf]
  %v175 = vld [vmem:[%s1 + $0x30] sm:$0xf]
  %v176 = vld [vmem:[%s1 + $0x34] sm:$0xf]
  %v177 = vld [vmem:[%s1 + $0x38] sm:$0xf]
  %v178 = vld [vmem:[%s1 + $0x3c] sm:$0xf]
  %v179 = vld [vmem:[%s1 + $0x40] sm:$0xf]
  %v180 = vld [vmem:[%s1 + $0x44] sm:$0xf]
  %v181 = vld [vmem:[%s1 + $0x48] sm:$0xf]
  %v182 = vld [vmem:[%s1 + $0x4c] sm:$0xf]
  %v183 = vld [vmem:[%s1 + $0x50] sm:$0xf]
  %v184 = vld [vmem:[%s1 + $0x54] sm:$0xf]
  %v185 = vld [vmem:[%s1 + $0x58] sm:$0xf]
  %v186 = vld [vmem:[%s1 + $0x5c] sm:$0xf]
  %v187 = vld [vmem:[%s2] sm:$0x1]
  %v188 = vperm.slane %v187, 0
  %v213 = vunpack.c.l.b16 %v163
  %v214 = vunpack.c.l.b16 %v164
  %v215 = vunpack.c.l.b16 %v165
  %v216 = vunpack.c.l.b16 %v166
  %v217 = vunpack.c.l.b16 %v167
  %v218 = vunpack.c.l.b16 %v168
  %v219 = vunpack.c.l.b16 %v169
  %v220 = vunpack.c.l.b16 %v170
  %v221 = vunpack.c.l.b16 %v171
  %v222 = vunpack.c.l.b16 %v172
  %v223 = vunpack.c.l.b16 %v173
  %v224 = vunpack.c.l.b16 %v174
  %v225 = vunpack.c.l.b16 %v175
  %v226 = vunpack.c.l.b16 %v176
  %v227 = vunpack.c.l.b16 %v177
  %v228 = vunpack.c.l.b16 %v178
  %v229 = vunpack.c.l.b16 %v179
  %v230 = vunpack.c.l.b16 %v180
  %v231 = vunpack.c.l.b16 %v181
  %v232 = vunpack.c.l.b16 %v182
  %v233 = vunpack.c.l.b16 %v183
  %v234 = vunpack.c.l.b16 %v184
  %v235 = vunpack.c.l.b16 %v185
  %v236 = vunpack.c.l.b16 %v186
  %v237 = vpack.c.b16 %v214, %v213
  %v238 = vpack.c.b16 %v216, %v215
  %v239 = vpack.c.b16 %v218, %v217
  %v240 = vpack.c.b16 %v220, %v219
  %v241 = vpack.c.b16 %v222, %v221
  %v242 = vpack.c.b16 %v224, %v223
  %v243 = vpack.c.b16 %v226, %v225
  %v244 = vpack.c.b16 %v228, %v227
  %v245 = vpack.c.b16 %v230, %v229
  %v246 = vpack.c.b16 %v232, %v231
  %v247 = vpack.c.b16 %v234, %v233
  %v248 = vpack.c.b16 %v236, %v235
  %v262 = vsel %vm153, %v150, 0
  %v265 = vsel %vm153, %v152, 0
  %v268 = vsel %vm153, %v151, 0
  %270 = vmatpush.bf16.msra.mxu0 %v244
  %271 = vmatpush.bf16.msra.mxu0 %v243
  %272 = vmatpush.bf16.msra.mxu0 %v242
  %273 = vmatpush.bf16.msra.mxu0 %v241
  %274 = vmatpush.bf16.msra.mxu0 %v240
  %275 = vmatpush.bf16.msra.mxu0 %v239
  %276 = vmatpush.bf16.msra.mxu0 %v238
  %277 = vmatpush.bf16.msra.mxu0 %v237
  %278 = vmatmul.bf16.gmra.mxu0 %v155
  %v279 = vpop.f32.mrf.mxu0
  %v280 = vadd.f32 %v188, %v279
  %v281 = vpop.f32.mrf.mxu0
  %v282 = vadd.f32 %v188, %v281
  %283 = vmatmul.bf16.gmra.mxu0 %v158
  %v284 = vpop.f32.mrf.mxu0
  %v285 = vadd.f32 %v188, %v284
  %v286 = vpop.f32.mrf.mxu0
  %v287 = vadd.f32 %v188, %v286
  %288 = vmatmul.bf16.gmra.mxu0 %v161
  %v289 = vpop.f32.mrf.mxu0
  %v290 = vadd.f32 %v188, %v289
  %v291 = vpop.f32.mrf.mxu0
  %292 = vdwg.mxu0
  %293 = vmatpush.bf16.msra.mxu0 0
  %294 = vmatpush.bf16.msra.mxu0 0
  %295 = vmatpush.bf16.msra.mxu0 0
  %296 = vmatpush.bf16.msra.mxu0 0
  %297 = vmatpush.bf16.msra.mxu0 %v248
  %298 = vmatpush.bf16.msra.mxu0 %v247
  %299 = vmatpush.bf16.msra.mxu0 %v246
  %300 = vmatpush.bf16.msra.mxu0 %v245
  %301 = vmatmul.bf16.gmra.mxu0 %v262
  %v302 = vpop.f32.mrf.mxu0
  %v303 = vadd.f32 %v280, %v302
  %v304 = vpop.f32.mrf.mxu0
  %v305 = vadd.f32 %v282, %v304
  %306 = vmatmul.bf16.gmra.mxu0 %v265
  %v307 = vpop.f32.mrf.mxu0
  %v308 = vadd.f32 %v285, %v307
  %v309 = vpop.f32.mrf.mxu0
  %v310 = vadd.f32 %v287, %v309
  %311 = vmatmul.bf16.gmra.mxu0 %v268
  %v312 = vpop.f32.mrf.mxu0
  %v313 = vadd.f32 %v290, %v312
  %v314 = vpop.f32.mrf.mxu0
  %315 = vdwg.mxu0
  %v316 = vmax.f32 %v303, 0.0
  %v317 = vmax.f32 %v305, 0.0
  %v318 = vmax.f32 %v308, 0.0
  %v319 = vmax.f32 %v310, 0.0
  %v320 = vmax.f32 %v313, 0.0
  %v321 = vld [vmem:[%s2 + $0x1] sm:$0x1]
  %v322 = vperm.slane %v321, 0
  %v323 = vmul.f32 %v316, %v322
  %v324 = vmul.f32 %v317, %v322
  %v325 = vmul.f32 %v318, %v322
  %v326 = vmul.f32 %v319, %v322
  %v327 = vmul.f32 %v320, %v322
  %v328 = vld [vmem:[%s2 + $0x2] sm:$0x1]
  %v329 = vperm.slane %v328, 0
  %v330 = vadd.f32 %v323, %v329
  %v331 = vadd.f32 %v324, %v329
  %v332 = vadd.f32 %v325, %v329
  %v333 = vadd.f32 %v326, %v329
  %v334 = vadd.f32 %v327, %v329
  %v335 = vmax.f32 %v330, 0.0
  %v336 = vmax.f32 %v331, 0.0
  %v337 = vmax.f32 %v332, 0.0
  %v338 = vmax.f32 %v333, 0.0
  %v339 = vmax.f32 %v334, 0.0
  %v340 = vpack.c.bf16 %v335, %v335
  %v341 = vpack.c.bf16 %v336, %v336
  %v342 = vpack.c.bf16 %v337, %v337
  %v343 = vpack.c.bf16 %v338, %v338
  %v344 = vpack.c.bf16 %v339, %v339
  %v346 = vshrl.u32 %v340, 16
  %v348 = vrot.slane %v346, 7
  %v349 = vshll.u32 %v340, 16
  %v351 = vor.u32 %v348, %v349
  %v352 = vrot.slane %v348, 4
  %v354 = vshrl.u32 %v341, 16
  %v356 = vrot.slane %v354, 7
  %v357 = vshll.u32 %v341, 16
  %v359 = vor.u32 %v356, %v357
  %v360 = vsel %vm41, %v352, %v359
  %v361 = vrot.slane %v356, 4
  %v363 = vshrl.u32 %v342, 16
  %v365 = vrot.slane %v363, 7
  %v366 = vshll.u32 %v342, 16
  %v368 = vor.u32 %v365, %v366
  %v369 = vsel %vm41, %v361, %v368
  %v370 = vrot.slane %v365, 4
  %v372 = vshrl.u32 %v343, 16
  %v374 = vrot.slane %v372, 7
  %v375 = vshll.u32 %v343, 16
  %v377 = vor.u32 %v374, %v375
  %v378 = vsel %vm41, %v370, %v377
  %v379 = vrot.slane %v374, 4
  %v381 = vshll.u32 %v344, 16
  %v383 = vsel %vm41, %v379, %v381
  %v389 = vld [vmem:[#allocation3] sm:$0xf]
  %v390 = vsel %vm63, %v351, %v389
  %391 = vst [vmem:[#allocation3] sm:$0xf] %v390
  %392 = vst.msk [vmem:[#allocation3 + $0x4] sm:$0xf] %vm67, %v360
  %393 = vst.msk [vmem:[#allocation3 + $0x8] sm:$0xf] %vm67, %v369
  %394 = vst.msk [vmem:[#allocation3 + $0xc] sm:$0xf] %vm67, %v378
  %395 = vst.msk [vmem:[#allocation3 + $0x10] sm:$0x1] %vm90, %v383
  %v396 = vld [vmem:[#allocation3] sm:$0x1]
  %v397 = vsel %vm23, 0, %v396
  %398 = vst [vmem:[#allocation3] sm:$0x1] %v397
  %v399 = vld [vmem:[#allocation3 + $0x8] sm:$0x1]
  %v400 = vsel %vm28, 0, %v399
  %401 = vst [vmem:[#allocation3 + $0x8] sm:$0x1] %v400
  %v402 = vld [vmem:[#allocation3 + $0x10] sm:$0x2]
  %v403 = vsel %vm34, 0, %v402
  %404 = vst [vmem:[#allocation3 + $0x10] sm:$0x2] %v403
  %v405 = vld [vmem:[#allocation3] sm:$0xf]
  %v406 = vld [vmem:[#allocation3 + $0x4] sm:$0xf]
  %v407 = vld [vmem:[#allocation3 + $0x8] sm:$0xf]
  %v408 = vld [vmem:[#allocation3 + $0xc] sm:$0xf]
  %v409 = vld [vmem:[#allocation3 + $0x10] sm:$0x1]
  %v410 = vld [vmem:[#allocation3] sm:$0xe]
  %v411 = vld [vmem:[#allocation3 + $0x10] sm:$0x3]
  %v417 = vunpack.c.l.b16 %v405
  %v418 = vunpack.c.l.b16 %v406
  %v419 = vunpack.c.l.b16 %v407
  %v420 = vunpack.c.l.b16 %v408
  %v421 = vunpack.c.l.b16 %v409
  %v422 = vpack.c.b16 %v418, %v417
  %v423 = vpack.c.b16 %v420, %v419
  %v424 = vpack.c.b16 %v421, %v421
  %v426 = vshrl.u32 %v422, 16
  %v428 = vshll.u32 %v422, 16
  %v430 = vrot.slane %v428, 1
  %v431 = vor.u32 %v426, %v430
  %v433 = vshll.u32 %v423, 16
  %v435 = vrot.slane %v433, 1
  %v436 = vsel %vm112, %v431, %v435
  %v437 = vshrl.u32 %v423, 16
  %v439 = vor.u32 %v437, %v435
  %v441 = vshll.u32 %v424, 16
  %v443 = vrot.slane %v441, 1
  %v444 = vsel %vm112, %v439, %v443
  %v445 = vshrl.u32 %v424, 16
  %447 = vrot.lane.b32.xlu0 %v436, 64
  %v448 = vpop.permute.xlu0 %447
  %449 = vrot.lane.b32.xlu0 %v444, 64
  %v450 = vpop.permute.xlu0 %449
  %451 = vrot.lane.b32.xlu0 %v445, 64
  %v452 = vpop.permute.xlu0 %451
  %v455 = vunpack.c.l.b16 %v410
  %v456 = vunpack.c.l.b16 %v411
  %v457 = vpack.c.b16 %v418, %v455
  %v458 = vpack.c.b16 %v456, %v456
  %v459 = vrot.slane %v457, 1
  %v460 = vrot.slane %v423, 1
  %v461 = vsel %vm147, %v459, %v460
  %v462 = vrot.slane %v458, 1
  %v463 = vsel %vm147, %v460, %v462
  %v465 = vsel %vm153, %v422, %v448
  %v468 = vsel %vm153, %v423, %v450
  %v471 = vsel %vm153, %v424, %v452
  %v473 = vld [vmem:[%s3] sm:$0xf]
  %v474 = vld [vmem:[%s3 + $0x4] sm:$0xf]
  %v475 = vld [vmem:[%s3 + $0x8] sm:$0xf]
  %v476 = vld [vmem:[%s3 + $0xc] sm:$0xf]
  %v477 = vld [vmem:[%s3 + $0x10] sm:$0xf]
  %v478 = vld [vmem:[%s3 + $0x14] sm:$0xf]
  %v479 = vld [vmem:[%s3 + $0x18] sm:$0xf]
  %v480 = vld [vmem:[%s3 + $0x1c] sm:$0xf]
  %v481 = vld [vmem:[%s3 + $0x20] sm:$0xf]
  %v482 = vld [vmem:[%s3 + $0x24] sm:$0xf]
  %v483 = vld [vmem:[%s3 + $0x28] sm:$0xf]
  %v484 = vld [vmem:[%s3 + $0x2c] sm:$0xf]
  %v485 = vld [vmem:[%s3 + $0x30] sm:$0xf]
  %v486 = vld [vmem:[%s3 + $0x34] sm:$0xf]
  %v487 = vld [vmem:[%s3 + $0x38] sm:$0xf]
  %v488 = vld [vmem:[%s3 + $0x3c] sm:$0xf]
  %v489 = vld [vmem:[%s3 + $0x40] sm:$0xf]
  %v490 = vld [vmem:[%s3 + $0x44] sm:$0xf]
  %v491 = vld [vmem:[%s3 + $0x48] sm:$0xf]
  %v492 = vld [vmem:[%s3 + $0x4c] sm:$0xf]
  %v493 = vld [vmem:[%s3 + $0x50] sm:$0xf]
  %v494 = vld [vmem:[%s3 + $0x54] sm:$0xf]
  %v495 = vld [vmem:[%s3 + $0x58] sm:$0xf]
  %v496 = vld [vmem:[%s3 + $0x5c] sm:$0xf]
  %v497 = vld [vmem:[%s4] sm:$0x1]
  %v498 = vperm.slane %v497, 0
  %v523 = vunpack.c.l.b16 %v473
  %v524 = vunpack.c.l.b16 %v474
  %v525 = vunpack.c.l.b16 %v475
  %v526 = vunpack.c.l.b16 %v476
  %v527 = vunpack.c.l.b16 %v477
  %v528 = vunpack.c.l.b16 %v478
  %v529 = vunpack.c.l.b16 %v479
  %v530 = vunpack.c.l.b16 %v480
  %v531 = vunpack.c.l.b16 %v481
  %v532 = vunpack.c.l.b16 %v482
  %v533 = vunpack.c.l.b16 %v483
  %v534 = vunpack.c.l.b16 %v484
  %v535 = vunpack.c.l.b16 %v485
  %v536 = vunpack.c.l.b16 %v486
  %v537 = vunpack.c.l.b16 %v487
  %v538 = vunpack.c.l.b16 %v488
  %v539 = vunpack.c.l.b16 %v489
  %v540 = vunpack.c.l.b16 %v490
  %v541 = vunpack.c.l.b16 %v491
  %v542 = vunpack.c.l.b16 %v492
  %v543 = vunpack.c.l.b16 %v493
  %v544 = vunpack.c.l.b16 %v494
  %v545 = vunpack.c.l.b16 %v495
  %v546 = vunpack.c.l.b16 %v496
  %v547 = vpack.c.b16 %v524, %v523
  %v548 = vpack.c.b16 %v526, %v525
  %v549 = vpack.c.b16 %v528, %v527
  %v550 = vpack.c.b16 %v530, %v529
  %v551 = vpack.c.b16 %v532, %v531
  %v552 = vpack.c.b16 %v534, %v533
  %v553 = vpack.c.b16 %v536, %v535
  %v554 = vpack.c.b16 %v538, %v537
  %v555 = vpack.c.b16 %v540, %v539
  %v556 = vpack.c.b16 %v542, %v541
  %v557 = vpack.c.b16 %v544, %v543
  %v558 = vpack.c.b16 %v546, %v545
  %v572 = vsel %vm153, %v461, 0
  %v575 = vsel %vm153, %v463, 0
  %v578 = vsel %vm153, %v462, 0
  %580 = vmatpush.bf16.msra.mxu0 %v554
  %581 = vmatpush.bf16.msra.mxu0 %v553
  %582 = vmatpush.bf16.msra.mxu0 %v552
  %583 = vmatpush.bf16.msra.mxu0 %v551
  %584 = vmatpush.bf16.msra.mxu0 %v550
  %585 = vmatpush.bf16.msra.mxu0 %v549
  %586 = vmatpush.bf16.msra.mxu0 %v548
  %587 = vmatpush.bf16.msra.mxu0 %v547
  %588 = vmatmul.bf16.gmra.mxu0 %v465
  %v589 = vpop.f32.mrf.mxu0
  %v590 = vadd.f32 %v498, %v589
  %v591 = vpop.f32.mrf.mxu0
  %v592 = vadd.f32 %v498, %v591
  %593 = vmatmul.bf16.gmra.mxu0 %v468
  %v594 = vpop.f32.mrf.mxu0
  %v595 = vadd.f32 %v498, %v594
  %v596 = vpop.f32.mrf.mxu0
  %v597 = vadd.f32 %v498, %v596
  %598 = vmatmul.bf16.gmra.mxu0 %v471
  %v599 = vpop.f32.mrf.mxu0
  %v600 = vadd.f32 %v498, %v599
  %v601 = vpop.f32.mrf.mxu0
  %602 = vdwg.mxu0
  %603 = vmatpush.bf16.msra.mxu0 0
  %604 = vmatpush.bf16.msra.mxu0 0
  %605 = vmatpush.bf16.msra.mxu0 0
  %606 = vmatpush.bf16.msra.mxu0 0
  %607 = vmatpush.bf16.msra.mxu0 %v558
  %608 = vmatpush.bf16.msra.mxu0 %v557
  %609 = vmatpush.bf16.msra.mxu0 %v556
  %610 = vmatpush.bf16.msra.mxu0 %v555
  %611 = vmatmul.bf16.gmra.mxu0 %v572
  %v612 = vpop.f32.mrf.mxu0
  %v613 = vadd.f32 %v590, %v612
  %v614 = vpop.f32.mrf.mxu0
  %v615 = vadd.f32 %v592, %v614
  %616 = vmatmul.bf16.gmra.mxu0 %v575
  %v617 = vpop.f32.mrf.mxu0
  %v618 = vadd.f32 %v595, %v617
  %v619 = vpop.f32.mrf.mxu0
  %v620 = vadd.f32 %v597, %v619
  %621 = vmatmul.bf16.gmra.mxu0 %v578
  %v622 = vpop.f32.mrf.mxu0
  %v623 = vadd.f32 %v600, %v622
  %v624 = vpop.f32.mrf.mxu0
  %625 = vdwg.mxu0
  %v626 = vmax.f32 %v613, 0.0
  %v627 = vmax.f32 %v615, 0.0
  %v628 = vmax.f32 %v618, 0.0
  %v629 = vmax.f32 %v620, 0.0
  %v630 = vmax.f32 %v623, 0.0
  %v631 = vld [vmem:[%s4 + $0x1] sm:$0x1]
  %v632 = vperm.slane %v631, 0
  %v633 = vmul.f32 %v626, %v632
  %v634 = vmul.f32 %v627, %v632
  %v635 = vmul.f32 %v628, %v632
  %v636 = vmul.f32 %v629, %v632
  %v637 = vmul.f32 %v630, %v632
  %v638 = vld [vmem:[%s4 + $0x2] sm:$0x1]
  %v639 = vperm.slane %v638, 0
  %v640 = vadd.f32 %v633, %v639
  %v641 = vadd.f32 %v634, %v639
  %v642 = vadd.f32 %v635, %v639
  %v643 = vadd.f32 %v636, %v639
  %v644 = vadd.f32 %v637, %v639
  %645 = vst [vmem:[%s5] sm:$0xff] %v640
  %646 = vst [vmem:[%s5 + $0x8] sm:$0xff] %v641
  %647 = vst [vmem:[%s5 + $0xf] sm:$0xfe] %v642
  %648 = vst [vmem:[%s5 + $0x17] sm:$0xff] %v643
  %649 = vst [vmem:[%s5 + $0x1f] sm:$0x1] %v644
  // Predicated region
  $region22: #{regionconv_forward.1} parent=0 // pred_check
    _
  $region23: #{regionconv_forward.1} parent=0 // pred_check_branch
    %651 = sbr.rel (0) target = $region25
  $region24: #{regionconv_forward.1} parent=0 // pred_region
    _
  $region25: #{regionconv_forward.1} parent=0 // pred_fallthru
    _
  // Predicated region
  $region26: #{regionconv_forward.1} parent=0 // pred_check
    _
  $region27: #{regionconv_forward.1} parent=0 // pred_check_branch
    %653 = sbr.rel (0) target = $region29
  $region28: #{regionconv_forward.1} parent=0 // pred_region
    _
  $region29: #{regionconv_forward.1} parent=0 // pred_fallthru
    _

</llo_original>
